<compile_context>
chip_gen: v7x
topology: tpu7x:2x2x1
jax: 0.10.0
libtpu: 0.0.40
codegen_flags: <defaults>
</compile_context>

<pallas_src>
import functools
import math

import jax
import jax.numpy as jnp
from jax.experimental import pallas as pl
from jax.experimental.pallas import tpu as pltpu

LANES = 128
MAX_BLOCK_ROWS = 4096   # 2 MiB per f32 input per buffer
SUB_ROWS = 256          # sub-chunk rows: keeps elementwise temps ~32 vregs


def _has_two_tensorcores():
    """True on chips with 2 TensorCores per device (v7x)."""
    try:
        kind = str(jax.devices()[0].device_kind).lower()
    except Exception:
        return False
    return "7" in kind


def _dice_kernel(pred_ref, gt_ref, mask_ref, *rest, n_rows, rows_per_block,
                 sub_rows, acc_sub, inner, has_weights, needs_mask):
    """Accumulates per-(sublane,lane) partials of [p*g*m, p*m, g*m]."""
    if has_weights:
        w_ref, out_ref = rest
    else:
        (out_ref,) = rest
        w_ref = None

    c = pl.program_id(0)          # core-split axis (size 1 on 1-TC chips)
    i = pl.program_id(1)          # reduction axis (arbitrary)

    @pl.when(i == 0)
    def _init():
        out_ref[...] = jnp.zeros_like(out_ref)

    R, L = rows_per_block, LANES
    n_sub = R // sub_rows

    def chunk_sums(j, mask_base=None):
        start = j * sub_rows
        if not isinstance(start, int):
            start = pl.multiple_of(start, sub_rows)
        sl = (pl.ds(start, sub_rows), slice(None))
        p = pred_ref[sl].astype(jnp.float32)
        g = gt_ref[sl].astype(jnp.float32)
        m = mask_ref[sl].astype(jnp.float32)
        if has_weights:
            m = m * w_ref[sl].astype(jnp.float32)
        if mask_base is not None:
            # Boundary block only: OOB rows can hold NaN/Inf garbage and
            # NaN * 0 == NaN, so zero every operand, not just m.
            row = (jax.lax.broadcasted_iota(jnp.int32, (sub_rows, L), 0)
                   + mask_base + start)
            valid = row < n_rows
            zero = jnp.float32(0.0)
            p = jnp.where(valid, p, zero)
            g = jnp.where(valid, g, zero)
            m = jnp.where(valid, m, zero)
        pm = p * m
        gm = g * m

        def rsum(x):
            # Sublane-aligned partial reduce to (acc_sub, L): plain VPU adds,
            # no cross-lane work; final acc_sub->1 reduce happens in wrapper.
            return jnp.sum(x.reshape(sub_rows // acc_sub, acc_sub, L), axis=0)

        return rsum(pm * g), rsum(pm), rsum(gm)

    def run(mask_base):
        if n_sub == 1:
            a0, a1, a2 = chunk_sums(0, mask_base)
        else:
            def body(j, acc):
                s0, s1, s2 = chunk_sums(j, mask_base)
                return (acc[0] + s0, acc[1] + s1, acc[2] + s2)
            zeros = jnp.zeros((acc_sub, L), jnp.float32)
            a0, a1, a2 = jax.lax.fori_loop(0, n_sub, body,
                                           (zeros, zeros, zeros))
        out_ref[0, 0, :, :] += a0   # intersection: sum(p*g*m)
        out_ref[0, 1, :, :] += a1   # sum(p*m)
        out_ref[0, 2, :, :] += a2   # sum(g*m)

    if not needs_mask:
        run(None)                   # static fast path: no masking compiled at all
    else:
        gb = c * inner + i                       # logical block id
        n_full = n_rows // rows_per_block        # blocks with no invalid rows

        @pl.when(gb < n_full)
        def _fast():
            run(None)

        @pl.when(gb >= n_full)
        def _boundary():
            run(gb * rows_per_block)


def dice_loss(pred, gt, mask, weights=None, eps=1e-6):
    """pred, gt: (N, 1, H, W); mask: (N, H, W); weights: optional (N, H, W)."""
    assert pred.ndim == 4, pred.ndim
    pred2 = pred[:, 0, :, :]
    gt2 = gt[:, 0, :, :]
    assert pred2.shape == gt2.shape
    assert pred2.shape == mask.shape
    has_weights = weights is not None
    if has_weights:
        assert weights.shape == mask.shape

    arrays = [pred2, gt2, mask] + ([weights] if has_weights else [])
    flats = [x.reshape(-1) for x in arrays]
    total = flats[0].size
    rem = total % LANES
    main = total - rem

    # Non-128-aligned tail (<128 elems) reduced in plain JAX: avoids the
    # jnp.pad round-trip that would copy every input through HBM.
    if rem:
        tp = flats[0][main:].astype(jnp.float32)
        tg = flats[1][main:].astype(jnp.float32)
        tm = flats[2][main:].astype(jnp.float32)
        if has_weights:
            tm = tm * flats[3][main:].astype(jnp.float32)
        tail = jnp.stack([jnp.sum(tp * tg * tm), jnp.sum(tp * tm),
                          jnp.sum(tg * tm)])
    else:
        tail = None

    if main == 0:
        sums = tail   # degenerate (<128 elements total): pure JAX
    else:
        if rem:
            flats = [f[:main] for f in flats]
        inputs = [f.reshape(-1, LANES) for f in flats]
        n_rows = main // LANES

        rows_per_block = min(MAX_BLOCK_ROWS, n_rows)
        nblocks = pl.cdiv(n_rows, rows_per_block)

        # 2-way split only where it can bind to 2 TensorCores (v7x); on 1-TC
        # chips it would only serialize and may force a wasted duplicate block.
        n_split = 2 if (_has_two_tensorcores() and nblocks >= 2) else 1
        inner = pl.cdiv(nblocks, n_split)
        needs_mask = (n_rows % rows_per_block != 0) or (n_split * inner != nblocks)

        sub_rows = math.gcd(rows_per_block, SUB_ROWS)
        acc_sub = 8 if sub_rows % 8 == 0 else sub_rows

        if n_split * inner == nblocks:
            def in_index(c, i):
                return (c * inner + i, 0)
        else:
            def in_index(c, i):
                # Clamp the duplicate tail block of an uneven split; its
                # contribution is fully masked out in-kernel.
                return (jnp.minimum(c * inner + i, nblocks - 1), 0)

        in_spec = pl.BlockSpec((rows_per_block, LANES), in_index)
        out_spec = pl.BlockSpec((1, 3, acc_sub, LANES),
                                lambda c, i: (c, 0, 0, 0))

        kernel = functools.partial(
            _dice_kernel, n_rows=n_rows, rows_per_block=rows_per_block,
            sub_rows=sub_rows, acc_sub=acc_sub, inner=inner,
            has_weights=has_weights, needs_mask=needs_mask)

        # Explicit VMEM budget: double-buffered inputs + headroom for Mosaic
        # temporaries (v5e scoped default is only 16 MiB; v7x physical 64 MiB).
        in_bytes = sum(2 * rows_per_block * LANES * x.dtype.itemsize
                       for x in inputs)
        vmem_limit = int(min(in_bytes + (12 << 20), 48 << 20))

        if n_split == 2:
            dim_sem = (getattr(pltpu, "CORE_PARALLEL", "parallel"),
                       getattr(pltpu, "ARBITRARY", "arbitrary"))
        else:
            dim_sem = ("arbitrary", "arbitrary")

        partials = pl.pallas_call(
            kernel,
            out_shape=jax.ShapeDtypeStruct((n_split, 3, acc_sub, LANES),
                                           jnp.float32),
            grid=(n_split, inner),
            in_specs=[in_spec] * len(inputs),
            out_specs=out_spec,
            compiler_params=pltpu.CompilerParams(
                dimension_semantics=dim_sem,
                vmem_limit_bytes=vmem_limit),
        )(*inputs)

        # Tiny combine (n_split * 3 * acc_sub * 128 elements) in plain JAX.
        sums = jnp.sum(partials, axis=(0, 2, 3))
        if tail is not None:
            sums = sums + tail

    intersection = sums[0]
    union = sums[1] + sums[2] + jnp.float32(eps)
    return jnp.float32(1.0) - jnp.float32(2.0) * intersection / union


def dice_loss_ref(pred, gt, mask, weights=None, eps=1e-6):
    pred2 = pred[:, 0, :, :].astype(jnp.float32)
    gt2 = gt[:, 0, :, :].astype(jnp.float32)
    mask = mask.astype(jnp.float32)
    if weights is not None:
        mask = weights.astype(jnp.float32) * mask
    inter = jnp.sum(pred2 * gt2 * mask)
    union = jnp.sum(pred2 * mask) + jnp.sum(gt2 * mask) + eps
    return 1.0 - 2.0 * inter / union


if __name__ == "__main__":
    key = jax.random.PRNGKey(0)
    k1, k2, k3, k4 = jax.random.split(key, 4)

    N, H, W = 2, 16, 16
    pred = jax.nn.sigmoid(jax.random.normal(k1, (N, 1, H, W), jnp.float32))
    gt = (jax.random.uniform(k2, (N, 1, H, W)) > 0.5).astype(jnp.float32)
    mask = (jax.random.uniform(k3, (N, H, W)) > 0.2).astype(jnp.float32)
    weights = jax.random.uniform(k4, (N, H, W), jnp.float32)

    loss = jax.block_until_ready(jax.jit(dice_loss)(pred, gt, mask, weights))
    ref = dice_loss_ref(pred, gt, mask, weights)
    assert float(loss) <= 1.0, f"Loss out of bounds: {loss}"
    assert abs(float(loss) - float(ref)) < 1e-5, (float(loss), float(ref))

    # Unweighted (3-input) kernel variant.
    loss_nw = jax.block_until_ready(jax.jit(dice_loss)(pred, gt, mask))
    ref_nw = dice_loss_ref(pred, gt, mask)
    assert abs(float(loss_nw) - float(ref_nw)) < 1e-5, (float(loss_nw), float(ref_nw))

    # Multi-block case: exercises the boundary-masked path (n_rows > 4096) and
    # the non-128-aligned tail handled in the wrapper (no jnp.pad copy).
    N2, H2, W2 = 1, 1030, 517
    kk = jax.random.split(jax.random.PRNGKey(1), 4)
    pred2 = jax.nn.sigmoid(jax.random.normal(kk[0], (N2, 1, H2, W2), jnp.float32))
    gt2 = (jax.random.uniform(kk[1], (N2, 1, H2, W2)) > 0.5).astype(jnp.float32)
    mask2 = (jax.random.uniform(kk[2], (N2, H2, W2)) > 0.2).astype(jnp.float32)
    weights2 = jax.random.uniform(kk[3], (N2, H2, W2), jnp.float32)
    loss2 = jax.block_until_ready(jax.jit(dice_loss)(pred2, gt2, mask2, weights2))
    ref2 = dice_loss_ref(pred2, gt2, mask2, weights2)
    assert abs(float(loss2) - float(ref2)) < 1e-4, (float(loss2), float(ref2))

    print("KERNEL_OK")
</pallas_src>

<mosaic_0001>
module attributes {stable_mosaic.version = 11 : i64} {
  func.func @_dice_kernel(%arg0: i32, %arg1: i32, %arg2: memref<4x128xf32, #tpu.memory_space<vmem>>, %arg3: memref<4x128xf32, #tpu.memory_space<vmem>>, %arg4: memref<4x128xf32, #tpu.memory_space<vmem>>, %arg5: memref<4x128xf32, #tpu.memory_space<vmem>>, %arg6: memref<1x3x4x128xf32, #tpu.memory_space<vmem>>) attributes {dimension_semantics = [#tpu.dimension_semantics<arbitrary>, #tpu.dimension_semantics<arbitrary>], iteration_bounds = array<i64: 1, 1>, scalar_prefetch = 0 : i64, scratch_operands = 0 : i64, tpu.core_type = #tpu.core_type<tc>, window_params = [{transform_indices = @transform_0, window_bounds = array<i64: 4, 128>}, {transform_indices = @transform_1, window_bounds = array<i64: 4, 128>}, {transform_indices = @transform_2, window_bounds = array<i64: 4, 128>}, {transform_indices = @transform_3, window_bounds = array<i64: 4, 128>}, {transform_indices = @transform_4, window_bounds = array<i64: 1, 3, 4, 128>}]} {
    %c0_i32 = arith.constant 0 : i32
    %0 = arith.cmpi eq, %arg1, %c0_i32 : i32
    %1 = arith.extui %0 : i1 to i32
    %c0_i32_0 = arith.constant 0 : i32
    %2 = arith.cmpi ne, %1, %c0_i32_0 : i32
    scf.if %2 {
      %cst_32 = arith.constant 0.000000e+00 : f32
      %35 = vector.broadcast %cst_32 : f32 to vector<1x3x4x128xf32>
      %c0_33 = arith.constant 0 : index
      %c0_34 = arith.constant 0 : index
      %c0_35 = arith.constant 0 : index
      %c0_36 = arith.constant 0 : index
      %36 = vector.load %arg6[%c0_33, %c0_34, %c0_35, %c0_36] : memref<1x3x4x128xf32, #tpu.memory_space<vmem>>, vector<1x3x4x128xf32>
      tpu.vector_store %arg6[%c0_33, %c0_34, %c0_35, %c0_36], %35 {strides = array<i32>} : memref<1x3x4x128xf32, #tpu.memory_space<vmem>>, vector<1x3x4x128xf32>,
    } else {
    }
    %c0 = arith.constant 0 : index
    %c0_1 = arith.constant 0 : index
    %3 = vector.load %arg2[%c0, %c0_1] : memref<4x128xf32, #tpu.memory_space<vmem>>, vector<4x128xf32>
    %c0_2 = arith.constant 0 : index
    %c0_3 = arith.constant 0 : index
    %4 = vector.load %arg3[%c0_2, %c0_3] : memref<4x128xf32, #tpu.memory_space<vmem>>, vector<4x128xf32>
    %c0_4 = arith.constant 0 : index
    %c0_5 = arith.constant 0 : index
    %5 = vector.load %arg4[%c0_4, %c0_5] : memref<4x128xf32, #tpu.memory_space<vmem>>, vector<4x128xf32>
    %c0_6 = arith.constant 0 : index
    %c0_7 = arith.constant 0 : index
    %6 = vector.load %arg5[%c0_6, %c0_7] : memref<4x128xf32, #tpu.memory_space<vmem>>, vector<4x128xf32>
    %7 = arith.mulf %5, %6 : vector<4x128xf32>
    %8 = arith.mulf %3, %7 : vector<4x128xf32>
    %9 = arith.mulf %4, %7 : vector<4x128xf32>
    %10 = arith.mulf %8, %4 : vector<4x128xf32>
    %11 = vector.shape_cast %10 : vector<4x128xf32> to vector<1x4x128xf32>
    %cst = arith.constant dense<0.000000e+00> : vector<4x128xf32>
    %12 = vector.multi_reduction <add>, %11, %cst [0] : vector<1x4x128xf32> to vector<4x128xf32>
    %13 = vector.shape_cast %8 : vector<4x128xf32> to vector<1x4x128xf32>
    %cst_8 = arith.constant dense<0.000000e+00> : vector<4x128xf32>
    %14 = vector.multi_reduction <add>, %13, %cst_8 [0] : vector<1x4x128xf32> to vector<4x128xf32>
    %15 = vector.shape_cast %9 : vector<4x128xf32> to vector<1x4x128xf32>
    %cst_9 = arith.constant dense<0.000000e+00> : vector<4x128xf32>
    %16 = vector.multi_reduction <add>, %15, %cst_9 [0] : vector<1x4x128xf32> to vector<4x128xf32>
    %c0_10 = arith.constant 0 : index
    %c0_11 = arith.constant 0 : index
    %c0_12 = arith.constant 0 : index
    %c0_13 = arith.constant 0 : index
    %17 = vector.load %arg6[%c0_10, %c0_11, %c0_12, %c0_13] : memref<1x3x4x128xf32, #tpu.memory_space<vmem>>, vector<1x1x4x128xf32>
    %18 = vector.shape_cast %17 : vector<1x1x4x128xf32> to vector<4x128xf32>
    %19 = arith.addf %18, %12 : vector<4x128xf32>
    %c0_14 = arith.constant 0 : index
    %c0_15 = arith.constant 0 : index
    %c0_16 = arith.constant 0 : index
    %c0_17 = arith.constant 0 : index
    %20 = vector.load %arg6[%c0_14, %c0_15, %c0_16, %c0_17] : memref<1x3x4x128xf32, #tpu.memory_space<vmem>>, vector<1x1x4x128xf32>
    %21 = vector.shape_cast %20 : vector<1x1x4x128xf32> to vector<4x128xf32>
    %22 = vector.shape_cast %19 : vector<4x128xf32> to vector<1x1x4x128xf32>
    tpu.vector_store %arg6[%c0_14, %c0_15, %c0_16, %c0_17], %22 {strides = array<i32>} : memref<1x3x4x128xf32, #tpu.memory_space<vmem>>, vector<1x1x4x128xf32>,
    %c0_18 = arith.constant 0 : index
    %c1 = arith.constant 1 : index
    %c0_19 = arith.constant 0 : index
    %c0_20 = arith.constant 0 : index
    %23 = vector.load %arg6[%c0_18, %c1, %c0_19, %c0_20] : memref<1x3x4x128xf32, #tpu.memory_space<vmem>>, vector<1x1x4x128xf32>
    %24 = vector.shape_cast %23 : vector<1x1x4x128xf32> to vector<4x128xf32>
    %25 = arith.addf %24, %14 : vector<4x128xf32>
    %c0_21 = arith.constant 0 : index
    %c1_22 = arith.constant 1 : index
    %c0_23 = arith.constant 0 : index
    %c0_24 = arith.constant 0 : index
    %26 = vector.load %arg6[%c0_21, %c1_22, %c0_23, %c0_24] : memref<1x3x4x128xf32, #tpu.memory_space<vmem>>, vector<1x1x4x128xf32>
    %27 = vector.shape_cast %26 : vector<1x1x4x128xf32> to vector<4x128xf32>
    %28 = vector.shape_cast %25 : vector<4x128xf32> to vector<1x1x4x128xf32>
    tpu.vector_store %arg6[%c0_21, %c1_22, %c0_23, %c0_24], %28 {strides = array<i32>} : memref<1x3x4x128xf32, #tpu.memory_space<vmem>>, vector<1x1x4x128xf32>,
    %c0_25 = arith.constant 0 : index
    %c2 = arith.constant 2 : index
    %c0_26 = arith.constant 0 : index
    %c0_27 = arith.constant 0 : index
    %29 = vector.load %arg6[%c0_25, %c2, %c0_26, %c0_27] : memref<1x3x4x128xf32, #tpu.memory_space<vmem>>, vector<1x1x4x128xf32>
    %30 = vector.shape_cast %29 : vector<1x1x4x128xf32> to vector<4x128xf32>
    %31 = arith.addf %30, %16 : vector<4x128xf32>
    %c0_28 = arith.constant 0 : index
    %c2_29 = arith.constant 2 : index
    %c0_30 = arith.constant 0 : index
    %c0_31 = arith.constant 0 : index
    %32 = vector.load %arg6[%c0_28, %c2_29, %c0_30, %c0_31] : memref<1x3x4x128xf32, #tpu.memory_space<vmem>>, vector<1x1x4x128xf32>
    %33 = vector.shape_cast %32 : vector<1x1x4x128xf32> to vector<4x128xf32>
    %34 = vector.shape_cast %31 : vector<4x128xf32> to vector<1x1x4x128xf32>
    tpu.vector_store %arg6[%c0_28, %c2_29, %c0_30, %c0_31], %34 {strides = array<i32>} : memref<1x3x4x128xf32, #tpu.memory_space<vmem>>, vector<1x1x4x128xf32>,
    return
  }
  func.func @transform_0(%arg0: i32, %arg1: i32) -> (i32, i32) {
    %c1_i32 = arith.constant 1 : i32
    %0 = arith.muli %arg0, %c1_i32 : i32
    %1 = arith.addi %0, %arg1 : i32
    %c0_i32 = arith.constant 0 : i32
    %c0_i32_0 = arith.constant 0 : i32
    return %1, %c0_i32 : i32, i32
  }
  func.func @transform_1(%arg0: i32, %arg1: i32) -> (i32, i32) {
    %c1_i32 = arith.constant 1 : i32
    %0 = arith.muli %arg0, %c1_i32 : i32
    %1 = arith.addi %0, %arg1 : i32
    %c0_i32 = arith.constant 0 : i32
    %c0_i32_0 = arith.constant 0 : i32
    return %1, %c0_i32 : i32, i32
  }
  func.func @transform_2(%arg0: i32, %arg1: i32) -> (i32, i32) {
    %c1_i32 = arith.constant 1 : i32
    %0 = arith.muli %arg0, %c1_i32 : i32
    %1 = arith.addi %0, %arg1 : i32
    %c0_i32 = arith.constant 0 : i32
    %c0_i32_0 = arith.constant 0 : i32
    return %1, %c0_i32 : i32, i32
  }
  func.func @transform_3(%arg0: i32, %arg1: i32) -> (i32, i32) {
    %c1_i32 = arith.constant 1 : i32
    %0 = arith.muli %arg0, %c1_i32 : i32
    %1 = arith.addi %0, %arg1 : i32
    %c0_i32 = arith.constant 0 : i32
    %c0_i32_0 = arith.constant 0 : i32
    return %1, %c0_i32 : i32, i32
  }
  func.func @transform_4(%arg0: i32, %arg1: i32) -> (i32, i32, i32, i32) {
    %c0_i32 = arith.constant 0 : i32
    %c0_i32_0 = arith.constant 0 : i32
    %c0_i32_1 = arith.constant 0 : i32
    %c0_i32_2 = arith.constant 0 : i32
    return %arg0, %c0_i32, %c0_i32_0, %c0_i32_1 : i32, i32, i32, i32
  }
}

</mosaic_0001>

<llo_original>
// kernel: squeeze.5
$region0: #{squeeze.5}
  %s0 = inlined_call_operand.hbm [shape: f32[2,1,16,16], index: 0, kind: input, shape index: {}]
  %s1 = inlined_call_operand.vmem [shape: f32[4,128], index: 1, kind: output, shape index: {}]
  $region1: #{squeeze.5} parent=0
    #allocation0 [shape = 'u8[16384]{0}', space=vmem, size = 0x4000, scoped, tag = 'operand span for operand 0']
    #allocation1 [shape = 's32[1]{0}', space=sflag, size = 0x4, scoped, tag = 'scoped memory for squeeze.5']
    #allocation2 [shape = 'u8[4096]{0}', space=vmem, size = 0x1000, scoped, tag = 'scoped mem for output reshape']
    %2 = vsyncpa [#allocation1], 0
    %s4 = ssub.s32 512, 512
    %5 = vsyncadd [#allocation1], %s4
    %s7 = sshll.u32 [#allocation0], 4
    %s8 = int_to_ptr.vmem [resolvable:$true] %s7
    %10 = dma.hbm_to_vmem [thread:$0]  %s0, 512, %s8, [#allocation1]
    %11 = dma.done [#allocation1], 512
    %v12 = vld [vmem:[#allocation0] ss:$8 sm:$0xf]
    %vm13 = vcmask 130048
    %14 = vst.msk [vmem:[#allocation2] sm:$0xf] %vm13, %v12
    %s15 = scalar_lea.vmem [#allocation0], 7
    %v16 = vld [vmem:[%s15] ss:$8 sm:$0xf]
    %17 = vrot.lane.b32.xlu0 %v16, 112
    %v18 = vpop.permute.xlu0 %17
    %vm19 = vcmask 1048448
    %20 = vst.msk [vmem:[#allocation2] sm:$0xf] %vm19, %v18
    %s21 = scalar_lea.vmem [#allocation0], 6
    %v22 = vld [vmem:[%s21] ss:$8 sm:$0xf]
    %23 = vrot.lane.b32.xlu0 %v22, 96
    %v24 = vpop.permute.xlu0 %23
    %vm25 = vcmask 917248
    %26 = vst.msk [vmem:[#allocation2] sm:$0xf] %vm25, %v24
    %s27 = scalar_lea.vmem [#allocation0], 5
    %v28 = vld [vmem:[%s27] ss:$8 sm:$0xf]
    %29 = vrot.lane.b32.xlu0 %v28, 80
    %v30 = vpop.permute.xlu0 %29
    %vm31 = vcmask 786048
    %32 = vst.msk [vmem:[#allocation2] sm:$0xf] %vm31, %v30
    %s33 = scalar_lea.vmem [#allocation0], 4
    %v34 = vld [vmem:[%s33] ss:$8 sm:$0xf]
    %35 = vrot.lane.b32.xlu0 %v34, 64
    %v36 = vpop.permute.xlu0 %35
    %vm37 = vcmask 654848
    %38 = vst.msk [vmem:[#allocation2] sm:$0xf] %vm37, %v36
    %s39 = scalar_lea.vmem [#allocation0], 3
    %v40 = vld [vmem:[%s39] ss:$8 sm:$0xf]
    %41 = vrot.lane.b32.xlu0 %v40, 48
    %v42 = vpop.permute.xlu0 %41
    %vm43 = vcmask 523648
    %44 = vst.msk [vmem:[#allocation2] sm:$0xf] %vm43, %v42
    %s45 = scalar_lea.vmem [#allocation0], 2
    %v46 = vld [vmem:[%s45] ss:$8 sm:$0xf]
    %47 = vrot.lane.b32.xlu0 %v46, 32
    %v48 = vpop.permute.xlu0 %47
    %vm49 = vcmask 392448
    %50 = vst.msk [vmem:[#allocation2] sm:$0xf] %vm49, %v48
    %s51 = scalar_lea.vmem [#allocation0], 1
    %v52 = vld [vmem:[%s51] ss:$8 sm:$0xf]
    %53 = vrot.lane.b32.xlu0 %v52, 16
    %v54 = vpop.permute.xlu0 %53
    %vm55 = vcmask 261248
    %56 = vst.msk [vmem:[#allocation2] sm:$0xf] %vm55, %v54
    %s58 = sshllo.u32 0, 4
    %v60 = vld [vmem:[#allocation2] sm:%s58]
    %s61 = sshllo.u32 0, 4
    %62 = vst [vmem:[%s1] sm:%s61] %v60
    %63 = vsyncpa [#allocation1], 1

// kernel: squeeze.6
$region0: #{squeeze.6}
  %s0 = inlined_call_operand.vmem [shape: f32[2,1,16,16], index: 0, kind: input, shape index: {}]
  %s1 = inlined_call_operand.vmem [shape: f32[4,128], index: 1, kind: output, shape index: {}]
  $region1: #{squeeze.6} parent=0
    #allocation0 [shape = 'u8[4096]{0}', space=vmem, size = 0x1000, scoped, tag = 'scoped mem for output reshape']
    %v2 = vld [vmem:[%s0] ss:$8 sm:$0xf]
    %vm3 = vcmask 130048
    %4 = vst.msk [vmem:[#allocation0] sm:$0xf] %vm3, %v2
    %s5 = scalar_lea.vmem %s0, 7
    %v6 = vld [vmem:[%s5] ss:$8 sm:$0xf]
    %7 = vrot.lane.b32.xlu0 %v6, 112
    %v8 = vpop.permute.xlu0 %7
    %vm9 = vcmask 1048448
    %10 = vst.msk [vmem:[#allocation0] sm:$0xf] %vm9, %v8
    %s11 = scalar_lea.vmem %s0, 6
    %v12 = vld [vmem:[%s11] ss:$8 sm:$0xf]
    %13 = vrot.lane.b32.xlu0 %v12, 96
    %v14 = vpop.permute.xlu0 %13
    %vm15 = vcmask 917248
    %16 = vst.msk [vmem:[#allocation0] sm:$0xf] %vm15, %v14
    %s17 = scalar_lea.vmem %s0, 5
    %v18 = vld [vmem:[%s17] ss:$8 sm:$0xf]
    %19 = vrot.lane.b32.xlu0 %v18, 80
    %v20 = vpop.permute.xlu0 %19
    %vm21 = vcmask 786048
    %22 = vst.msk [vmem:[#allocation0] sm:$0xf] %vm21, %v20
    %s23 = scalar_lea.vmem %s0, 4
    %v24 = vld [vmem:[%s23] ss:$8 sm:$0xf]
    %25 = vrot.lane.b32.xlu0 %v24, 64
    %v26 = vpop.permute.xlu0 %25
    %vm27 = vcmask 654848
    %28 = vst.msk [vmem:[#allocation0] sm:$0xf] %vm27, %v26
    %s29 = scalar_lea.vmem %s0, 3
    %v30 = vld [vmem:[%s29] ss:$8 sm:$0xf]
    %31 = vrot.lane.b32.xlu0 %v30, 48
    %v32 = vpop.permute.xlu0 %31
    %vm33 = vcmask 523648
    %34 = vst.msk [vmem:[#allocation0] sm:$0xf] %vm33, %v32
    %s35 = scalar_lea.vmem %s0, 2
    %v36 = vld [vmem:[%s35] ss:$8 sm:$0xf]
    %37 = vrot.lane.b32.xlu0 %v36, 32
    %v38 = vpop.permute.xlu0 %37
    %vm39 = vcmask 392448
    %40 = vst.msk [vmem:[#allocation0] sm:$0xf] %vm39, %v38
    %s41 = scalar_lea.vmem %s0, 1
    %v42 = vld [vmem:[%s41] ss:$8 sm:$0xf]
    %43 = vrot.lane.b32.xlu0 %v42, 16
    %v44 = vpop.permute.xlu0 %43
    %vm45 = vcmask 261248
    %46 = vst.msk [vmem:[#allocation0] sm:$0xf] %vm45, %v44
    %s48 = sshllo.u32 0, 4
    %v50 = vld [vmem:[#allocation0] sm:%s48]
    %s51 = sshllo.u32 0, 4
    %52 = vst [vmem:[%s1] sm:%s51] %v50

// kernel: dice_loss.1
$region0: #{dice_loss.1}
  #allocation0 [shape = 'u32[]', space=smem, size = 0x4, offset = 0x4, fixed_abs, tag = 'smem constant byte address 0x4 - core index']
  #allocation1 [shape = 'u32[144,128]{1,0:T(1,128)}', space=vmem, size = 0x12000, scoped, tag = 'internal scratch']
  %s0 = inlined_call_operand.vmem [shape: f32[4,128], index: 0, kind: input, shape index: {}]
  %s1 = inlined_call_operand.vmem [shape: f32[4,128], index: 1, kind: input, shape index: {}]
  %s2 = inlined_call_operand.vmem [shape: f32[4,128], index: 2, kind: input, shape index: {}]
  %s3 = inlined_call_operand.vmem [shape: f32[4,128], index: 3, kind: input, shape index: {}]
  %s4 = inlined_call_operand.vmem [shape: f32[1,3,4,128], index: 4, kind: output, shape index: {}]
  %s5 = sld [smem:[#allocation0]]
  $region30: #{dice_loss.1} parent=0
    _
  %s7 = ssub.s32 1, %s5
  %s8 = scalar_select 0, %s7, %s5
  // Predicated region
  $region2: #{dice_loss.1} parent=0 // pred_check
    _
  $region3: #{dice_loss.1} parent=0 // pred_check_branch
    %10 = sbr.rel (0) target = $region5
  $region4: #{dice_loss.1} parent=0 // pred_region
    %s11 = sadd.s32 0, 0
    %p12 = scmp.lt.s32.totalorder %s11, 0
    %s13 = scalar_select %p12, %s11, 0
    %s14 = smul.addr %s13, 4
    %s15 = scalar_lea.vmem %s0, %s14
    %s16 = sadd.s32 0, 0
  $region5: #{dice_loss.1} parent=0 // pred_fallthru
    _
  // Predicated region
  $region6: #{dice_loss.1} parent=0 // pred_check
    _
  $region7: #{dice_loss.1} parent=0 // pred_check_branch
    %18 = sbr.rel (0) target = $region9
  $region8: #{dice_loss.1} parent=0 // pred_region
    %s19 = sadd.s32 0, 0
    %p20 = scmp.lt.s32.totalorder %s19, 0
    %s21 = scalar_select %p20, %s19, 0
    %s22 = smul.addr %s21, 4
    %s23 = scalar_lea.vmem %s1, %s22
    %s24 = sadd.s32 0, 0
  $region9: #{dice_loss.1} parent=0 // pred_fallthru
    _
  // Predicated region
  $region10: #{dice_loss.1} parent=0 // pred_check
    _
  $region11: #{dice_loss.1} parent=0 // pred_check_branch
    %26 = sbr.rel (0) target = $region13
  $region12: #{dice_loss.1} parent=0 // pred_region
    %s27 = sadd.s32 0, 0
    %p28 = scmp.lt.s32.totalorder %s27, 0
    %s29 = scalar_select %p28, %s27, 0
    %s30 = smul.addr %s29, 4
    %s31 = scalar_lea.vmem %s2, %s30
    %s32 = sadd.s32 0, 0
  $region13: #{dice_loss.1} parent=0 // pred_fallthru
    _
  // Predicated region
  $region14: #{dice_loss.1} parent=0 // pred_check
    _
  $region15: #{dice_loss.1} parent=0 // pred_check_branch
    %34 = sbr.rel (0) target = $region17
  $region16: #{dice_loss.1} parent=0 // pred_region
    %s35 = sadd.s32 0, 0
    %p36 = scmp.lt.s32.totalorder %s35, 0
    %s37 = scalar_select %p36, %s35, 0
    %s38 = smul.addr %s37, 4
    %s39 = scalar_lea.vmem %s3, %s38
    %s40 = sadd.s32 0, 0
  $region17: #{dice_loss.1} parent=0 // pred_fallthru
    _
  %s41 = sadd.s32 0, 0
  %p42 = scmp.lt.s32.totalorder %s41, 0
  %s43 = scalar_select %p42, %s41, 0
  %s44 = smul.addr %s43, 4
  %s45 = scalar_lea.vmem %s0, %s44
  %s46 = sadd.s32 0, 0
  %p47 = scmp.lt.s32.totalorder %s46, 0
  %s48 = scalar_select %p47, %s46, 0
  %s49 = smul.addr %s48, 4
  %s50 = scalar_lea.vmem %s1, %s49
  %s51 = sadd.s32 0, 0
  %p52 = scmp.lt.s32.totalorder %s51, 0
  %s53 = scalar_select %p52, %s51, 0
  %s54 = smul.addr %s53, 4
  %s55 = scalar_lea.vmem %s2, %s54
  %s56 = sadd.s32 0, 0
  %p57 = scmp.lt.s32.totalorder %s56, 0
  %s58 = scalar_select %p57, %s56, 0
  %s59 = smul.addr %s58, 4
  %s60 = scalar_lea.vmem %s3, %s59
  %s61 = sadd.s32 0, 0
  %p62 = scmp.lt.s32.totalorder %s61, 0
  %s63 = scalar_select %p62, %s61, 0
  %s64 = smul.addr %s63, 4
  %s65 = scalar_lea.vmem %s0, %s64
  %s66 = sadd.s32 0, 0
  %s67 = sadd.s32 0, 0
  %p68 = scmp.lt.s32.totalorder %s67, 0
  %s69 = scalar_select %p68, %s67, 0
  %s70 = smul.addr %s69, 4
  %s71 = scalar_lea.vmem %s1, %s70
  %s72 = sadd.s32 0, 0
  %s73 = sadd.s32 0, 0
  %p74 = scmp.lt.s32.totalorder %s73, 0
  %s75 = scalar_select %p74, %s73, 0
  %s76 = smul.addr %s75, 4
  %s77 = scalar_lea.vmem %s2, %s76
  %s78 = sadd.s32 0, 0
  %s79 = sadd.s32 0, 0
  %p80 = scmp.lt.s32.totalorder %s79, 0
  %s81 = scalar_select %p80, %s79, 0
  %s82 = smul.addr %s81, 4
  %s83 = scalar_lea.vmem %s3, %s82
  %s84 = sadd.s32 0, 0
  %p85 = scmp.eq.s32.totalorder 0, 0
  // Predicated region
  $region18: #{dice_loss.1} parent=0 // pred_check
    %p86 = pneg %p85
  $region19: #{dice_loss.1} parent=0 // pred_check_branch
    %88 = sbr.rel (%p86) target = $region21
  $region20: #{dice_loss.1} parent=0 // pred_region
    %89 = vst [vmem:[%s4] sm:$0xf] 0.0
    %90 = vst [vmem:[%s4 + $0x4] sm:$0xf] 0.0
    %91 = vst [vmem:[%s4 + $0x8] sm:$0xf] 0.0
  $region21: #{dice_loss.1} parent=0 // pred_fallthru
    _
  %v92 = vld [vmem:[%s65] sm:$0xf]
  %v93 = vld [vmem:[%s71] sm:$0xf]
  %v94 = vld [vmem:[%s77] sm:$0xf]
  %v95 = vld [vmem:[%s83] sm:$0xf]
  %v96 = vmul.f32 %v94, %v95
  %v97 = vmul.f32 %v92, %v96
  %v98 = vmul.f32 %v93, %v96
  %v99 = vmul.f32 %v97, %v93
  %v100 = vadd.f32 %v99, 0.0
  %v101 = vadd.f32 %v97, 0.0
  %v102 = vadd.f32 %v98, 0.0
  %v103 = vld [vmem:[%s4] sm:$0xf]
  %v104 = vadd.f32 %v103, %v100
  %105 = vst [vmem:[%s4] sm:$0xf] %v104
  %s106 = scalar_lea.vmem %s4, 4
  %v107 = vld [vmem:[%s106] sm:$0xf]
  %v108 = vadd.f32 %v107, %v101
  %109 = vst [vmem:[%s106] sm:$0xf] %v108
  %s110 = scalar_lea.vmem %s4, 8
  %v111 = vld [vmem:[%s110] sm:$0xf]
  %v112 = vadd.f32 %v111, %v102
  %113 = vst [vmem:[%s110] sm:$0xf] %v112
  // Predicated region
  $region22: #{dice_loss.1} parent=0 // pred_check
    _
  $region23: #{dice_loss.1} parent=0 // pred_check_branch
    %115 = sbr.rel (0) target = $region25
  $region24: #{dice_loss.1} parent=0 // pred_region
    _
  $region25: #{dice_loss.1} parent=0 // pred_fallthru
    _
  // Predicated region
  $region26: #{dice_loss.1} parent=0 // pred_check
    _
  $region27: #{dice_loss.1} parent=0 // pred_check_branch
    %117 = sbr.rel (0) target = $region29
  $region28: #{dice_loss.1} parent=0 // pred_region
    _
  $region29: #{dice_loss.1} parent=0 // pred_fallthru
    _

</llo_original>
